<compile_context>
chip_gen: v6e
topology: v6e:2x2x1
jax: 0.10.0
libtpu: 0.0.40
codegen_flags: <defaults>
</compile_context>

<pallas_src>
import functools
import math

import jax
import jax.numpy as jnp
from jax.experimental import pallas as pl
from jax.experimental.pallas import tpu as pltpu


def _conv_circulant(conv_w, d_in, padding):
    """Expand a circular Conv1d weight (1, S, K) into a dense (S*d_in, d_in) matrix.

    conv[b, j] = sum_{s,k} W[s,k] * x[b, s, (j + k - padding) mod d_in]
               = (x.reshape(B, S*d_in) @ A2d)[b, j]
    """
    wc = conv_w[0]                                       # (S, K)
    s_dim, k_dim = wc.shape
    j = jnp.arange(d_in)
    a = jnp.zeros((s_dim, d_in, d_in), jnp.float32)      # [s, m(source), j(output)]
    for k in range(k_dim):
        m = (j + k - padding) % d_in                     # source index for each output j
        onehot = jax.nn.one_hot(m, d_in, dtype=jnp.float32)      # [j, m]
        a = a + wc[:, k][:, None, None] * onehot.T[None, :, :]   # -> [s, m, j]
    return a.reshape(s_dim * d_in, d_in)


def _projector_kernel(n_hidden_layers, x_ref, stats_ref, a0c_ref, w0s_ref, b0_ref, *rest):
    """rest = [w1, b1, ..., w_{L-1}, b_{L-1}, w_out, out_ref]."""
    out_ref = rest[-1]
    params = rest[:-1]

    x = x_ref[...].astype(jnp.float32)           # (TB, S*D) read as bf16, widened once
    stats = stats_ref[...].astype(jnp.float32)   # (TB, D)

    # ---- first Linear with the circular conv folded in (no conv matmul, no concat) ----
    h = jnp.dot(x, a0c_ref[...], preferred_element_type=jnp.float32)
    h = h + jnp.dot(stats, w0s_ref[...], preferred_element_type=jnp.float32)
    h = jnp.maximum(h + b0_ref[...], 0.0)

    # ---- remaining hidden layers ----
    idx = 0
    for _ in range(n_hidden_layers - 1):
        w = params[idx][...]
        b = params[idx + 1][...]
        idx += 2
        h = jnp.maximum(jnp.dot(h, w, preferred_element_type=jnp.float32) + b, 0.0)

    # ---- final no-bias Linear; unpadded (TB, d_out) store, contiguous HBM range ----
    out_ref[...] = jnp.dot(h, params[idx][...], preferred_element_type=jnp.float32)


def projector_forward(x, stats, conv_w, hidden_ws, hidden_bs, w_out,
                      *, block_b=512, padding=1):
    """x: (B,S,D) f32, stats: (B,1,D) f32, conv_w: (1,S,K) f32,
    hidden_ws[i]: (in_i, out_i), hidden_bs[i]: (out_i,), w_out: (H_last, d_out)."""
    B, S, D = x.shape
    K = conv_w.shape[-1]
    # PyTorch module hard-codes padding=1 (torch>=1.5); length is preserved only for K==3.
    assert K == 2 * padding + 1, "circular conv must preserve the sequence length"
    assert block_b % 128 == 0, "block_b must be a multiple of 128"
    n_hidden = len(hidden_ws)
    d_out = w_out.shape[1]

    # ---- batch tiling: no wrapper padding; partial last block is masked by Pallas ----
    if B > block_b:
        # Keep the tile a multiple of 128 (lane/sublane friendly) but aim for >=4 grid
        # steps so both v7x TensorCores get work.
        tb = min(block_b, max(128, ((B + 3) // 4 + 127) // 128 * 128))
        grid = (pl.cdiv(B, tb),)
    else:
        tb = B                                   # single block; block == full dims is legal
        grid = (1,)

    # ---- activations: reshape is free; bf16 halves the dominant HBM read ----
    x2d = x.reshape(B, S * D).astype(jnp.bfloat16)
    stats2d = stats.reshape(B, D).astype(jnp.bfloat16)

    # ---- parameter preprocessing (trace-time, weights only, exact) ----
    a2d = _conv_circulant(conv_w, D, padding)                     # (S*D, D)
    w0 = hidden_ws[0].astype(jnp.float32)                         # (2*D, H0), (in,out)
    a0c = a2d @ w0[:D]                                            # fold conv into layer 0
    w0s = w0[D:]                                                  # stats half of layer 0
    b0 = hidden_bs[0].reshape(1, -1).astype(jnp.float32)
    weights = [a0c, w0s, b0]
    for w, b in zip(hidden_ws[1:], hidden_bs[1:]):
        weights += [w.astype(jnp.float32), b.reshape(1, -1).astype(jnp.float32)]
    weights.append(w_out.astype(jnp.float32))                     # unpadded (H_last, d_out)

    def batch_spec(feat):
        return pl.BlockSpec((tb, feat), lambda i: (i, 0))

    def resident_spec(shape):
        zeros = (0,) * len(shape)
        return pl.BlockSpec(tuple(shape), lambda i: zeros)        # constant -> VMEM-resident

    # ---- scoped-VMEM: only raise the limit if a large tile sweep needs it (v5e) ----
    bytes_per_row = (S * D) * 2 + D * 2 + d_out * 4               # bf16 x, bf16 stats, f32 out
    weight_bytes = sum(int(w.size) * 4 for w in weights)
    vmem_needed = 2 * tb * bytes_per_row + weight_bytes + (1 << 20)
    cp_kwargs = dict(dimension_semantics=("parallel",))
    if vmem_needed > 12 * 1024 * 1024:
        cp_kwargs["vmem_limit_bytes"] = min(int(1.5 * vmem_needed), 56 * 1024 * 1024)

    kernel = functools.partial(_projector_kernel, n_hidden)
    out = pl.pallas_call(
        kernel,
        out_shape=jax.ShapeDtypeStruct((B, d_out), jnp.float32),
        grid=grid,
        in_specs=[batch_spec(S * D), batch_spec(D)]
                 + [resident_spec(w.shape) for w in weights],
        out_specs=batch_spec(d_out),
        compiler_params=pltpu.CompilerParams(**cp_kwargs),
    )(x2d, stats2d, *weights)
    return out


def _reference(x, stats, conv_w, hidden_ws, hidden_bs, w_out):
    """Pure-JAX f32 reference matching the PyTorch forward."""
    B, S, D = x.shape
    K = conv_w.shape[-1]
    pad = K // 2
    xp = jnp.concatenate([x[..., D - pad:], x, x[..., :pad]], axis=-1)
    conv = jnp.zeros((B, D), jnp.float32)
    for k in range(K):
        conv = conv + jnp.einsum('bsd,s->bd', xp[..., k:k + D], conv_w[0, :, k])
    z = jnp.concatenate([conv[:, None, :], stats], axis=1).reshape(B, -1)
    h = z
    for w, b in zip(hidden_ws, hidden_bs):
        h = jax.nn.relu(h @ w + b)
    return h @ w_out


if __name__ == "__main__":
    # Module hyperparams (small, consistent with Projector.__init__)
    n_steps, d_in = 8, 16
    d_hidden = [32, 32]
    n_hidden_layers = 2
    d_output = 8
    kernel_size = 3

    key = jax.random.PRNGKey(0)
    ks = jax.random.split(key, 10)

    # Deterministic synthetic parameters (shapes from the module __init__).
    conv_w = jax.random.normal(ks[0], (1, n_steps, kernel_size), jnp.float32) * 0.2
    dims = [2 * d_in] + d_hidden
    hidden_ws, hidden_bs = [], []
    for i in range(n_hidden_layers):
        hidden_ws.append(
            jax.random.normal(ks[1 + 2 * i], (dims[i], dims[i + 1]), jnp.float32)
            / math.sqrt(dims[i]))
        hidden_bs.append(
            jax.random.normal(ks[2 + 2 * i], (dims[i + 1],), jnp.float32) * 0.1)
    w_out = jax.random.normal(ks[5], (d_hidden[-1], d_output), jnp.float32) \
        / math.sqrt(d_hidden[-1])

    # bf16 activation reads -> slightly looser tolerance vs the f32 reference.
    RTOL = ATOL = 2e-2

    # --- case 1: tiny batch (single block, block == full dims) ---
    B = 2
    x = jax.random.normal(ks[6], (B, n_steps, d_in), jnp.float32)
    stats = jax.random.normal(ks[7], (B, 1, d_in), jnp.float32)
    y = jax.block_until_ready(
        projector_forward(x, stats, conv_w, hidden_ws, hidden_bs, w_out))
    y_ref = _reference(x, stats, conv_w, hidden_ws, hidden_bs, w_out)
    assert y.shape == (B, d_output)
    assert jnp.allclose(y, y_ref, rtol=RTOL, atol=ATOL), "mismatch vs reference (B=2)"

    # --- case 2: multi-step parallel batch grid with a partial (masked) last block ---
    B2 = 272   # with block_b=128 -> grid=(3,), last block has 16 valid rows
    x2 = jax.random.normal(ks[8], (B2, n_steps, d_in), jnp.float32)
    stats2 = jax.random.normal(ks[9], (B2, 1, d_in), jnp.float32)
    y2 = jax.block_until_ready(
        projector_forward(x2, stats2, conv_w, hidden_ws, hidden_bs, w_out, block_b=128))
    y2_ref = _reference(x2, stats2, conv_w, hidden_ws, hidden_bs, w_out)
    assert y2.shape == (B2, d_output)
    assert jnp.allclose(y2, y2_ref, rtol=RTOL, atol=ATOL), "mismatch vs reference (B=272)"

    print("KERNEL_OK")
</pallas_src>

<mosaic_0001>
module attributes {stable_mosaic.version = 11 : i64} {
  func.func @_projector_kernel(%arg0: i32, %arg1: memref<2x128xbf16, #tpu.memory_space<vmem>>, %arg2: memref<2x16xbf16, #tpu.memory_space<vmem>>, %arg3: memref<128x32xf32, #tpu.memory_space<vmem>>, %arg4: memref<16x32xf32, #tpu.memory_space<vmem>>, %arg5: memref<1x32xf32, #tpu.memory_space<vmem>>, %arg6: memref<32x32xf32, #tpu.memory_space<vmem>>, %arg7: memref<1x32xf32, #tpu.memory_space<vmem>>, %arg8: memref<32x8xf32, #tpu.memory_space<vmem>>, %arg9: memref<2x8xf32, #tpu.memory_space<vmem>>) attributes {dimension_semantics = [#tpu.dimension_semantics<parallel>], iteration_bounds = array<i64: 1>, scalar_prefetch = 0 : i64, scratch_operands = 0 : i64, tpu.core_type = #tpu.core_type<tc>, window_params = [{transform_indices = @transform_0, window_bounds = array<i64: 2, 128>}, {transform_indices = @transform_1, window_bounds = array<i64: 2, 16>}, {pipeline_mode = #tpu.pipeline_mode<synchronous>, transform_indices = @transform_2, window_bounds = array<i64: 128, 32>}, {pipeline_mode = #tpu.pipeline_mode<synchronous>, transform_indices = @transform_3, window_bounds = array<i64: 16, 32>}, {pipeline_mode = #tpu.pipeline_mode<synchronous>, transform_indices = @transform_4, window_bounds = array<i64: 1, 32>}, {pipeline_mode = #tpu.pipeline_mode<synchronous>, transform_indices = @transform_5, window_bounds = array<i64: 32, 32>}, {pipeline_mode = #tpu.pipeline_mode<synchronous>, transform_indices = @transform_6, window_bounds = array<i64: 1, 32>}, {pipeline_mode = #tpu.pipeline_mode<synchronous>, transform_indices = @transform_7, window_bounds = array<i64: 32, 8>}, {transform_indices = @transform_8, window_bounds = array<i64: 2, 8>}]} {
    %c0 = arith.constant 0 : index
    %c0_0 = arith.constant 0 : index
    %0 = vector.load %arg1[%c0, %c0_0] : memref<2x128xbf16, #tpu.memory_space<vmem>>, vector<2x128xbf16>
    %1 = arith.extf %0 : vector<2x128xbf16> to vector<2x128xf32>
    %c0_1 = arith.constant 0 : index
    %c0_2 = arith.constant 0 : index
    %2 = vector.load %arg2[%c0_1, %c0_2] : memref<2x16xbf16, #tpu.memory_space<vmem>>, vector<2x16xbf16>
    %3 = arith.extf %2 : vector<2x16xbf16> to vector<2x16xf32>
    %c0_3 = arith.constant 0 : index
    %c0_4 = arith.constant 0 : index
    %4 = vector.load %arg3[%c0_3, %c0_4] : memref<128x32xf32, #tpu.memory_space<vmem>>, vector<128x32xf32>
    %cst = arith.constant dense<0.000000e+00> : vector<2x32xf32>
    %5 = tpu.matmul %1, %4, %cst {dimension_numbers = #tpu.dot_dimension_numbers<[1], [0], [0], [1], [0, 0, 1, 1], [], []>} : vector<2x128xf32>, vector<128x32xf32>, vector<2x32xf32> -> vector<2x32xf32>
    %c0_5 = arith.constant 0 : index
    %c0_6 = arith.constant 0 : index
    %6 = vector.load %arg4[%c0_5, %c0_6] : memref<16x32xf32, #tpu.memory_space<vmem>>, vector<16x32xf32>
    %cst_7 = arith.constant dense<0.000000e+00> : vector<2x32xf32>
    %7 = tpu.matmul %3, %6, %cst_7 {dimension_numbers = #tpu.dot_dimension_numbers<[1], [0], [0], [1], [0, 0, 1, 1], [], []>} : vector<2x16xf32>, vector<16x32xf32>, vector<2x32xf32> -> vector<2x32xf32>
    %8 = arith.addf %5, %7 : vector<2x32xf32>
    %c0_8 = arith.constant 0 : index
    %c0_9 = arith.constant 0 : index
    %9 = vector.load %arg5[%c0_8, %c0_9] : memref<1x32xf32, #tpu.memory_space<vmem>>, vector<1x32xf32>
    %10 = vector.broadcast %9 : vector<1x32xf32> to vector<2x32xf32>
    %11 = arith.addf %8, %10 : vector<2x32xf32>
    %cst_10 = arith.constant 0.000000e+00 : f32
    %12 = vector.broadcast %cst_10 : f32 to vector<2x32xf32>
    %13 = arith.maximumf %11, %12 : vector<2x32xf32>
    %c0_11 = arith.constant 0 : index
    %c0_12 = arith.constant 0 : index
    %14 = vector.load %arg6[%c0_11, %c0_12] : memref<32x32xf32, #tpu.memory_space<vmem>>, vector<32x32xf32>
    %c0_13 = arith.constant 0 : index
    %c0_14 = arith.constant 0 : index
    %15 = vector.load %arg7[%c0_13, %c0_14] : memref<1x32xf32, #tpu.memory_space<vmem>>, vector<1x32xf32>
    %cst_15 = arith.constant dense<0.000000e+00> : vector<2x32xf32>
    %16 = tpu.matmul %13, %14, %cst_15 {dimension_numbers = #tpu.dot_dimension_numbers<[1], [0], [0], [1], [0, 0, 1, 1], [], []>} : vector<2x32xf32>, vector<32x32xf32>, vector<2x32xf32> -> vector<2x32xf32>
    %17 = vector.broadcast %15 : vector<1x32xf32> to vector<2x32xf32>
    %18 = arith.addf %16, %17 : vector<2x32xf32>
    %cst_16 = arith.constant 0.000000e+00 : f32
    %19 = vector.broadcast %cst_16 : f32 to vector<2x32xf32>
    %20 = arith.maximumf %18, %19 : vector<2x32xf32>
    %c0_17 = arith.constant 0 : index
    %c0_18 = arith.constant 0 : index
    %21 = vector.load %arg8[%c0_17, %c0_18] : memref<32x8xf32, #tpu.memory_space<vmem>>, vector<32x8xf32>
    %cst_19 = arith.constant dense<0.000000e+00> : vector<2x8xf32>
    %22 = tpu.matmul %20, %21, %cst_19 {dimension_numbers = #tpu.dot_dimension_numbers<[1], [0], [0], [1], [0, 0, 1, 1], [], []>} : vector<2x32xf32>, vector<32x8xf32>, vector<2x8xf32> -> vector<2x8xf32>
    %c0_20 = arith.constant 0 : index
    %c0_21 = arith.constant 0 : index
    %23 = vector.load %arg9[%c0_20, %c0_21] : memref<2x8xf32, #tpu.memory_space<vmem>>, vector<2x8xf32>
    tpu.vector_store %arg9[%c0_20, %c0_21], %22 {strides = array<i32>} : memref<2x8xf32, #tpu.memory_space<vmem>>, vector<2x8xf32>,
    return
  }
  func.func @transform_0(%arg0: i32) -> (i32, i32) {
    %c0_i32 = arith.constant 0 : i32
    %c0_i32_0 = arith.constant 0 : i32
    return %arg0, %c0_i32 : i32, i32
  }
  func.func @transform_1(%arg0: i32) -> (i32, i32) {
    %c0_i32 = arith.constant 0 : i32
    %c0_i32_0 = arith.constant 0 : i32
    return %arg0, %c0_i32 : i32, i32
  }
  func.func @transform_2(%arg0: i32) -> (i32, i32) {
    %c0_i32 = arith.constant 0 : i32
    %c0_i32_0 = arith.constant 0 : i32
    %c0_i32_1 = arith.constant 0 : i32
    return %c0_i32, %c0_i32_0 : i32, i32
  }
  func.func @transform_3(%arg0: i32) -> (i32, i32) {
    %c0_i32 = arith.constant 0 : i32
    %c0_i32_0 = arith.constant 0 : i32
    %c0_i32_1 = arith.constant 0 : i32
    return %c0_i32, %c0_i32_0 : i32, i32
  }
  func.func @transform_4(%arg0: i32) -> (i32, i32) {
    %c0_i32 = arith.constant 0 : i32
    %c0_i32_0 = arith.constant 0 : i32
    %c0_i32_1 = arith.constant 0 : i32
    return %c0_i32, %c0_i32_0 : i32, i32
  }
  func.func @transform_5(%arg0: i32) -> (i32, i32) {
    %c0_i32 = arith.constant 0 : i32
    %c0_i32_0 = arith.constant 0 : i32
    %c0_i32_1 = arith.constant 0 : i32
    return %c0_i32, %c0_i32_0 : i32, i32
  }
  func.func @transform_6(%arg0: i32) -> (i32, i32) {
    %c0_i32 = arith.constant 0 : i32
    %c0_i32_0 = arith.constant 0 : i32
    %c0_i32_1 = arith.constant 0 : i32
    return %c0_i32, %c0_i32_0 : i32, i32
  }
  func.func @transform_7(%arg0: i32) -> (i32, i32) {
    %c0_i32 = arith.constant 0 : i32
    %c0_i32_0 = arith.constant 0 : i32
    %c0_i32_1 = arith.constant 0 : i32
    return %c0_i32, %c0_i32_0 : i32, i32
  }
  func.func @transform_8(%arg0: i32) -> (i32, i32) {
    %c0_i32 = arith.constant 0 : i32
    %c0_i32_0 = arith.constant 0 : i32
    return %arg0, %c0_i32 : i32, i32
  }
}

</mosaic_0001>

<llo_original>
// kernel: tpu_custom_call.1
$region0: #{tpu_custom_call.1}
  #allocation0 [shape = 'u32[]', space=smem, size = 0x4, offset = 0x4, fixed_abs, tag = 'smem constant byte address 0x4 - core index']
  #allocation1 [shape = 'u32[144,128]{1,0:T(1,128)}', space=vmem, size = 0x12000, scoped, tag = 'internal scratch']
  %s0 = inlined_call_operand.vmem [shape: bf16[2,128], index: 0, kind: input, shape index: {}]
  %s1 = inlined_call_operand.vmem [shape: bf16[2,16], index: 1, kind: input, shape index: {}]
  %s2 = inlined_call_operand.vmem [shape: f32[128,32], index: 2, kind: input, shape index: {}]
  %s3 = inlined_call_operand.vmem [shape: f32[16,32], index: 3, kind: input, shape index: {}]
  %s4 = inlined_call_operand.vmem [shape: f32[1,32], index: 4, kind: input, shape index: {}]
  %s5 = inlined_call_operand.vmem [shape: f32[32,32], index: 5, kind: input, shape index: {}]
  %s6 = inlined_call_operand.vmem [shape: f32[1,32], index: 6, kind: input, shape index: {}]
  %s7 = inlined_call_operand.vmem [shape: f32[32,8], index: 7, kind: input, shape index: {}]
  %s8 = inlined_call_operand.hbm [shape: f32[2,8], index: 8, kind: output, shape index: {}]
  %s9 = sld [smem:[#allocation0]]
  $region42: #{tpu_custom_call.1} parent=0
    _
  %s11 = ssub.s32 1, %s9
  %s12 = scalar_select 0, %s11, %s9
  $region1: #{tpu_custom_call.1} parent=0
    #allocation2 [shape = 'u8[1024]{0}', space=vmem, size = 0x400, scoped, tag = 'output window, operand 0, single buffered']
    #allocation3 [shape = 's32[1]{0}', space=sflag, size = 0x4, scoped, tag = 'scoped memory for tpu_custom_call.1']
    %13 = vsyncpa [#allocation3], 0
    // Predicated region
    $region2: #{tpu_custom_call.1} parent=1 // pred_check
      _
    $region3: #{tpu_custom_call.1} parent=1 // pred_check_branch
      %15 = sbr.rel (0) target = $region5
    $region4: #{tpu_custom_call.1} parent=1 // pred_region
      _
    $region5: #{tpu_custom_call.1} parent=1 // pred_fallthru
      _
    // Predicated region
    $region6: #{tpu_custom_call.1} parent=1 // pred_check
      _
    $region7: #{tpu_custom_call.1} parent=1 // pred_check_branch
      %17 = sbr.rel (0) target = $region9
    $region8: #{tpu_custom_call.1} parent=1 // pred_region
      _
    $region9: #{tpu_custom_call.1} parent=1 // pred_fallthru
      _
    // Predicated region
    $region10: #{tpu_custom_call.1} parent=1 // pred_check
      _
    $region11: #{tpu_custom_call.1} parent=1 // pred_check_branch
      %19 = sbr.rel (0) target = $region13
    $region12: #{tpu_custom_call.1} parent=1 // pred_region
      _
    $region13: #{tpu_custom_call.1} parent=1 // pred_fallthru
      _
    // Predicated region
    $region14: #{tpu_custom_call.1} parent=1 // pred_check
      _
    $region15: #{tpu_custom_call.1} parent=1 // pred_check_branch
      %21 = sbr.rel (0) target = $region17
    $region16: #{tpu_custom_call.1} parent=1 // pred_region
      _
    $region17: #{tpu_custom_call.1} parent=1 // pred_fallthru
      _
    // Predicated region
    $region18: #{tpu_custom_call.1} parent=1 // pred_check
      _
    $region19: #{tpu_custom_call.1} parent=1 // pred_check_branch
      %23 = sbr.rel (0) target = $region21
    $region20: #{tpu_custom_call.1} parent=1 // pred_region
      _
    $region21: #{tpu_custom_call.1} parent=1 // pred_fallthru
      _
    // Predicated region
    $region22: #{tpu_custom_call.1} parent=1 // pred_check
      _
    $region23: #{tpu_custom_call.1} parent=1 // pred_check_branch
      %25 = sbr.rel (0) target = $region25
    $region24: #{tpu_custom_call.1} parent=1 // pred_region
      _
    $region25: #{tpu_custom_call.1} parent=1 // pred_fallthru
      _
    // Predicated region
    $region26: #{tpu_custom_call.1} parent=1 // pred_check
      _
    $region27: #{tpu_custom_call.1} parent=1 // pred_check_branch
      %27 = sbr.rel (0) target = $region29
    $region28: #{tpu_custom_call.1} parent=1 // pred_region
      _
    $region29: #{tpu_custom_call.1} parent=1 // pred_fallthru
      _
    // Predicated region
    $region30: #{tpu_custom_call.1} parent=1 // pred_check
      _
    $region31: #{tpu_custom_call.1} parent=1 // pred_check_branch
      %29 = sbr.rel (0) target = $region33
    $region32: #{tpu_custom_call.1} parent=1 // pred_region
      _
    $region33: #{tpu_custom_call.1} parent=1 // pred_fallthru
      _
    %v30 = vld [vmem:[%s0] sm:$0x1]
    %v31 = vunpack.c.l.bf16 %v30
    %v32 = vld [vmem:[%s1] sm:$0x1]
    %v33 = vunpack.c.l.bf16 %v32
    %v34 = vld [vmem:[%s2] sm:$0xff]
    %v35 = vld [vmem:[%s2 + $0x8] sm:$0xff]
    %v36 = vld [vmem:[%s2 + $0x10] sm:$0xff]
    %v37 = vld [vmem:[%s2 + $0x18] sm:$0xff]
    %v38 = vld [vmem:[%s2 + $0x20] sm:$0xff]
    %v39 = vld [vmem:[%s2 + $0x28] sm:$0xff]
    %v40 = vld [vmem:[%s2 + $0x30] sm:$0xff]
    %v41 = vld [vmem:[%s2 + $0x38] sm:$0xff]
    %v42 = vld [vmem:[%s2 + $0x40] sm:$0xff]
    %v43 = vld [vmem:[%s2 + $0x48] sm:$0xff]
    %v44 = vld [vmem:[%s2 + $0x50] sm:$0xff]
    %v45 = vld [vmem:[%s2 + $0x58] sm:$0xff]
    %v46 = vld [vmem:[%s2 + $0x60] sm:$0xff]
    %v47 = vld [vmem:[%s2 + $0x68] sm:$0xff]
    %v48 = vld [vmem:[%s2 + $0x70] sm:$0xff]
    %v49 = vld [vmem:[%s2 + $0x78] sm:$0xff]
    %v50 = vld [vmem:[%s3] sm:$0xff]
    %v51 = vld [vmem:[%s3 + $0x8] sm:$0xff]
    %vm52 = vcmask 130048
    %v54 = vsel %vm52, %v33, 0
    %56 = vmatprep.subr.mxu0 0.0
    %57 = vmatpush1.msra.mxu0 0.0
    %58 = vmatprep.subr.mxu0 0.0
    %59 = vmatpush1.msra.mxu0 0.0
    %60 = vmatprep.subr.mxu0 0.0
    %61 = vmatpush1.msra.mxu0 0.0
    %62 = vmatprep.subr.mxu0 0.0
    %63 = vmatpush1.msra.mxu0 0.0
    %64 = vmatprep.subr.mxu0 0.0
    %65 = vmatpush1.msra.mxu0 0.0
    %66 = vmatprep.subr.mxu0 0.0
    %67 = vmatpush1.msra.mxu0 0.0
    %68 = vmatprep.subr.mxu0 0.0
    %69 = vmatpush1.msra.mxu0 0.0
    %70 = vmatprep.subr.mxu0 0.0
    %71 = vmatpush1.msra.mxu0 0.0
    %72 = vmatprep.subr.mxu0 0.0
    %73 = vmatpush1.msra.mxu0 0.0
    %74 = vmatprep.subr.mxu0 0.0
    %75 = vmatpush1.msra.mxu0 0.0
    %76 = vmatprep.subr.mxu0 0.0
    %77 = vmatpush1.msra.mxu0 0.0
    %78 = vmatprep.subr.mxu0 0.0
    %79 = vmatpush1.msra.mxu0 0.0
    %80 = vmatprep.subr.mxu0 0.0
    %81 = vmatpush1.msra.mxu0 0.0
    %82 = vmatprep.subr.mxu0 0.0
    %83 = vmatpush1.msra.mxu0 0.0
    %84 = vmatprep.subr.mxu0 0.0
    %85 = vmatpush1.msra.mxu0 %v51
    %86 = vmatprep.subr.mxu0 0.0
    %87 = vmatpush1.msra.mxu0 %v50
    %88 = vmatprep.subr.mxu0 0.0
    %89 = vmatpush2.msra.mxu0 0.0
    %90 = vmatprep.subr.mxu0 0.0
    %91 = vmatpush2.msra.mxu0 0.0
    %92 = vmatprep.subr.mxu0 0.0
    %93 = vmatpush2.msra.mxu0 0.0
    %94 = vmatprep.subr.mxu0 0.0
    %95 = vmatpush2.msra.mxu0 0.0
    %96 = vmatprep.subr.mxu0 0.0
    %97 = vmatpush2.msra.mxu0 0.0
    %98 = vmatprep.subr.mxu0 0.0
    %99 = vmatpush2.msra.mxu0 0.0
    %100 = vmatprep.subr.mxu0 0.0
    %101 = vmatpush2.msra.mxu0 0.0
    %102 = vmatprep.subr.mxu0 0.0
    %103 = vmatpush2.msra.mxu0 0.0
    %104 = vmatprep.subr.mxu0 0.0
    %105 = vmatpush2.msra.mxu0 0.0
    %106 = vmatprep.subr.mxu0 0.0
    %107 = vmatpush2.msra.mxu0 0.0
    %108 = vmatprep.subr.mxu0 0.0
    %109 = vmatpush2.msra.mxu0 0.0
    %110 = vmatprep.subr.mxu0 0.0
    %111 = vmatpush2.msra.mxu0 0.0
    %112 = vmatprep.subr.mxu0 0.0
    %113 = vmatpush2.msra.mxu0 0.0
    %114 = vmatprep.subr.mxu0 0.0
    %115 = vmatpush2.msra.mxu0 0.0
    %116 = vmatprep.subr.mxu0 0.0
    %117 = vmatpush2.msra.mxu0 0.0
    %118 = vmatprep.subr.mxu0 0.0
    %119 = vmatpush2.msra.mxu0 0.0
    %120 = vmatprep.mubr.f32.mxu0 0.0
    %121 = vmatmul.mubr.f32.gmra.mxu0 %v54
    %v122 = vpop.f32.mrf.mxu0
    %v123 = vadd.f32 0.0, %v122
    %v124 = vpop.f32.mrf.mxu0
    %125 = vdwg.mxu0
    %126 = vmatprep.subr.mxu0 0.0
    %127 = vmatpush1.msra.mxu0 %v49
    %128 = vmatprep.subr.mxu0 0.0
    %129 = vmatpush1.msra.mxu0 %v48
    %130 = vmatprep.subr.mxu0 0.0
    %131 = vmatpush1.msra.mxu0 %v47
    %132 = vmatprep.subr.mxu0 0.0
    %133 = vmatpush1.msra.mxu0 %v46
    %134 = vmatprep.subr.mxu0 0.0
    %135 = vmatpush1.msra.mxu0 %v45
    %136 = vmatprep.subr.mxu0 0.0
    %137 = vmatpush1.msra.mxu0 %v44
    %138 = vmatprep.subr.mxu0 0.0
    %139 = vmatpush1.msra.mxu0 %v43
    %140 = vmatprep.subr.mxu0 0.0
    %141 = vmatpush1.msra.mxu0 %v42
    %142 = vmatprep.subr.mxu0 0.0
    %143 = vmatpush1.msra.mxu0 %v41
    %144 = vmatprep.subr.mxu0 0.0
    %145 = vmatpush1.msra.mxu0 %v40
    %146 = vmatprep.subr.mxu0 0.0
    %147 = vmatpush1.msra.mxu0 %v39
    %148 = vmatprep.subr.mxu0 0.0
    %149 = vmatpush1.msra.mxu0 %v38
    %150 = vmatprep.subr.mxu0 0.0
    %151 = vmatpush1.msra.mxu0 %v37
    %152 = vmatprep.subr.mxu0 0.0
    %153 = vmatpush1.msra.mxu0 %v36
    %154 = vmatprep.subr.mxu0 0.0
    %155 = vmatpush1.msra.mxu0 %v35
    %156 = vmatprep.subr.mxu0 0.0
    %157 = vmatpush1.msra.mxu0 %v34
    %158 = vmatprep.subr.mxu0 0.0
    %159 = vmatpush2.msra.mxu0 0.0
    %160 = vmatprep.subr.mxu0 0.0
    %161 = vmatpush2.msra.mxu0 0.0
    %162 = vmatprep.subr.mxu0 0.0
    %163 = vmatpush2.msra.mxu0 0.0
    %164 = vmatprep.subr.mxu0 0.0
    %165 = vmatpush2.msra.mxu0 0.0
    %166 = vmatprep.subr.mxu0 0.0
    %167 = vmatpush2.msra.mxu0 0.0
    %168 = vmatprep.subr.mxu0 0.0
    %169 = vmatpush2.msra.mxu0 0.0
    %170 = vmatprep.subr.mxu0 0.0
    %171 = vmatpush2.msra.mxu0 0.0
    %172 = vmatprep.subr.mxu0 0.0
    %173 = vmatpush2.msra.mxu0 0.0
    %174 = vmatprep.subr.mxu0 0.0
    %175 = vmatpush2.msra.mxu0 0.0
    %176 = vmatprep.subr.mxu0 0.0
    %177 = vmatpush2.msra.mxu0 0.0
    %178 = vmatprep.subr.mxu0 0.0
    %179 = vmatpush2.msra.mxu0 0.0
    %180 = vmatprep.subr.mxu0 0.0
    %181 = vmatpush2.msra.mxu0 0.0
    %182 = vmatprep.subr.mxu0 0.0
    %183 = vmatpush2.msra.mxu0 0.0
    %184 = vmatprep.subr.mxu0 0.0
    %185 = vmatpush2.msra.mxu0 0.0
    %186 = vmatprep.subr.mxu0 0.0
    %187 = vmatpush2.msra.mxu0 0.0
    %188 = vmatprep.subr.mxu0 0.0
    %189 = vmatpush2.msra.mxu0 0.0
    %190 = vmatprep.mubr.f32.mxu0 0.0
    %191 = vmatmul.mubr.f32.gmra.mxu0 %v31
    %v192 = vpop.f32.mrf.mxu0
    %v193 = vadd.f32 %v123, %v192
    %v194 = vpop.f32.mrf.mxu0
    %195 = vdwg.mxu0
    %v196 = vld [vmem:[%s4] sm:$0x1]
    %v198 = vlaneseq
    %v199 = vshrl.u32 %v198, 7
    %v200 = vsub.s32 0, %v199
    %v201 = vrot.slane %v196, %v200
    %v203 = vadd.f32 %v193, %v201
    %v204 = vmax.f32 %v203, 0.0
    %v205 = vld [vmem:[%s5] sm:$0xff]
    %v206 = vld [vmem:[%s5 + $0x8] sm:$0xff]
    %v207 = vld [vmem:[%s5 + $0x10] sm:$0xff]
    %v208 = vld [vmem:[%s5 + $0x18] sm:$0xff]
    %v209 = vld [vmem:[%s6] sm:$0x1]
    %v211 = vlaneseq
    %v212 = vshrl.u32 %v211, 7
    %v213 = vsub.s32 0, %v212
    %v214 = vrot.slane %v209, %v213
    %vm216 = vcmask 261120
    %v218 = vsel %vm216, %v204, 0
    %220 = vmatprep.subr.mxu0 0.0
    %221 = vmatpush1.msra.mxu0 0.0
    %222 = vmatprep.subr.mxu0 0.0
    %223 = vmatpush1.msra.mxu0 0.0
    %224 = vmatprep.subr.mxu0 0.0
    %225 = vmatpush1.msra.mxu0 0.0
    %226 = vmatprep.subr.mxu0 0.0
    %227 = vmatpush1.msra.mxu0 0.0
    %228 = vmatprep.subr.mxu0 0.0
    %229 = vmatpush1.msra.mxu0 0.0
    %230 = vmatprep.subr.mxu0 0.0
    %231 = vmatpush1.msra.mxu0 0.0
    %232 = vmatprep.subr.mxu0 0.0
    %233 = vmatpush1.msra.mxu0 0.0
    %234 = vmatprep.subr.mxu0 0.0
    %235 = vmatpush1.msra.mxu0 0.0
    %236 = vmatprep.subr.mxu0 0.0
    %237 = vmatpush1.msra.mxu0 0.0
    %238 = vmatprep.subr.mxu0 0.0
    %239 = vmatpush1.msra.mxu0 0.0
    %240 = vmatprep.subr.mxu0 0.0
    %241 = vmatpush1.msra.mxu0 0.0
    %242 = vmatprep.subr.mxu0 0.0
    %243 = vmatpush1.msra.mxu0 0.0
    %244 = vmatprep.subr.mxu0 0.0
    %245 = vmatpush1.msra.mxu0 %v208
    %246 = vmatprep.subr.mxu0 0.0
    %247 = vmatpush1.msra.mxu0 %v207
    %248 = vmatprep.subr.mxu0 0.0
    %249 = vmatpush1.msra.mxu0 %v206
    %250 = vmatprep.subr.mxu0 0.0
    %251 = vmatpush1.msra.mxu0 %v205
    %252 = vmatprep.subr.mxu0 0.0
    %253 = vmatpush2.msra.mxu0 0.0
    %254 = vmatprep.subr.mxu0 0.0
    %255 = vmatpush2.msra.mxu0 0.0
    %256 = vmatprep.subr.mxu0 0.0
    %257 = vmatpush2.msra.mxu0 0.0
    %258 = vmatprep.subr.mxu0 0.0
    %259 = vmatpush2.msra.mxu0 0.0
    %260 = vmatprep.subr.mxu0 0.0
    %261 = vmatpush2.msra.mxu0 0.0
    %262 = vmatprep.subr.mxu0 0.0
    %263 = vmatpush2.msra.mxu0 0.0
    %264 = vmatprep.subr.mxu0 0.0
    %265 = vmatpush2.msra.mxu0 0.0
    %266 = vmatprep.subr.mxu0 0.0
    %267 = vmatpush2.msra.mxu0 0.0
    %268 = vmatprep.subr.mxu0 0.0
    %269 = vmatpush2.msra.mxu0 0.0
    %270 = vmatprep.subr.mxu0 0.0
    %271 = vmatpush2.msra.mxu0 0.0
    %272 = vmatprep.subr.mxu0 0.0
    %273 = vmatpush2.msra.mxu0 0.0
    %274 = vmatprep.subr.mxu0 0.0
    %275 = vmatpush2.msra.mxu0 0.0
    %276 = vmatprep.subr.mxu0 0.0
    %277 = vmatpush2.msra.mxu0 0.0
    %278 = vmatprep.subr.mxu0 0.0
    %279 = vmatpush2.msra.mxu0 0.0
    %280 = vmatprep.subr.mxu0 0.0
    %281 = vmatpush2.msra.mxu0 0.0
    %282 = vmatprep.subr.mxu0 0.0
    %283 = vmatpush2.msra.mxu0 0.0
    %284 = vmatprep.mubr.f32.mxu0 0.0
    %285 = vmatmul.mubr.f32.gmra.mxu0 %v218
    %v286 = vpop.f32.mrf.mxu0
    %v287 = vadd.f32 %v214, %v286
    %v288 = vpop.f32.mrf.mxu0
    %289 = vdwg.mxu0
    %v290 = vmax.f32 %v287, 0.0
    %v291 = vld [vmem:[%s7] sm:$0xff]
    %v292 = vld [vmem:[%s7 + $0x8] sm:$0xff]
    %v293 = vld [vmem:[%s7 + $0x10] sm:$0xff]
    %v294 = vld [vmem:[%s7 + $0x18] sm:$0xff]
    %v296 = vsel %vm216, %v290, 0
    %298 = vmatprep.subr.mxu0 0.0
    %299 = vmatpush1.msra.mxu0 0.0
    %300 = vmatprep.subr.mxu0 0.0
    %301 = vmatpush1.msra.mxu0 0.0
    %302 = vmatprep.subr.mxu0 0.0
    %303 = vmatpush1.msra.mxu0 0.0
    %304 = vmatprep.subr.mxu0 0.0
    %305 = vmatpush1.msra.mxu0 0.0
    %306 = vmatprep.subr.mxu0 0.0
    %307 = vmatpush1.msra.mxu0 0.0
    %308 = vmatprep.subr.mxu0 0.0
    %309 = vmatpush1.msra.mxu0 0.0
    %310 = vmatprep.subr.mxu0 0.0
    %311 = vmatpush1.msra.mxu0 0.0
    %312 = vmatprep.subr.mxu0 0.0
    %313 = vmatpush1.msra.mxu0 0.0
    %314 = vmatprep.subr.mxu0 0.0
    %315 = vmatpush1.msra.mxu0 0.0
    %316 = vmatprep.subr.mxu0 0.0
    %317 = vmatpush1.msra.mxu0 0.0
    %318 = vmatprep.subr.mxu0 0.0
    %319 = vmatpush1.msra.mxu0 0.0
    %320 = vmatprep.subr.mxu0 0.0
    %321 = vmatpush1.msra.mxu0 0.0
    %322 = vmatprep.subr.mxu0 0.0
    %323 = vmatpush1.msra.mxu0 %v294
    %324 = vmatprep.subr.mxu0 0.0
    %325 = vmatpush1.msra.mxu0 %v293
    %326 = vmatprep.subr.mxu0 0.0
    %327 = vmatpush1.msra.mxu0 %v292
    %328 = vmatprep.subr.mxu0 0.0
    %329 = vmatpush1.msra.mxu0 %v291
    %330 = vmatprep.subr.mxu0 0.0
    %331 = vmatpush2.msra.mxu0 0.0
    %332 = vmatprep.subr.mxu0 0.0
    %333 = vmatpush2.msra.mxu0 0.0
    %334 = vmatprep.subr.mxu0 0.0
    %335 = vmatpush2.msra.mxu0 0.0
    %336 = vmatprep.subr.mxu0 0.0
    %337 = vmatpush2.msra.mxu0 0.0
    %338 = vmatprep.subr.mxu0 0.0
    %339 = vmatpush2.msra.mxu0 0.0
    %340 = vmatprep.subr.mxu0 0.0
    %341 = vmatpush2.msra.mxu0 0.0
    %342 = vmatprep.subr.mxu0 0.0
    %343 = vmatpush2.msra.mxu0 0.0
    %344 = vmatprep.subr.mxu0 0.0
    %345 = vmatpush2.msra.mxu0 0.0
    %346 = vmatprep.subr.mxu0 0.0
    %347 = vmatpush2.msra.mxu0 0.0
    %348 = vmatprep.subr.mxu0 0.0
    %349 = vmatpush2.msra.mxu0 0.0
    %350 = vmatprep.subr.mxu0 0.0
    %351 = vmatpush2.msra.mxu0 0.0
    %352 = vmatprep.subr.mxu0 0.0
    %353 = vmatpush2.msra.mxu0 0.0
    %354 = vmatprep.subr.mxu0 0.0
    %355 = vmatpush2.msra.mxu0 0.0
    %356 = vmatprep.subr.mxu0 0.0
    %357 = vmatpush2.msra.mxu0 0.0
    %358 = vmatprep.subr.mxu0 0.0
    %359 = vmatpush2.msra.mxu0 0.0
    %360 = vmatprep.subr.mxu0 0.0
    %361 = vmatpush2.msra.mxu0 0.0
    %362 = vmatprep.mubr.f32.mxu0 0.0
    %363 = vmatmul.mubr.f32.gmra.mxu0 %v296
    %v364 = vpop.f32.mrf.mxu0
    %v365 = vadd.f32 0.0, %v364
    %v366 = vpop.f32.mrf.mxu0
    %367 = vdwg.mxu0
    %vm368 = vcmask 58368
    %369 = vst.msk [vmem:[#allocation2] sm:$0x3] %vm368, %v365
    // Predicated region
    $region34: #{tpu_custom_call.1} parent=1 // pred_check
      _
    $region35: #{tpu_custom_call.1} parent=1 // pred_check_branch
      %371 = sbr.rel (0) target = $region37
    $region36: #{tpu_custom_call.1} parent=1 // pred_region
      %s373 = ssub.s32 32, 32
      %374 = vsyncadd [#allocation3], %s373
      %s376 = sshll.u32 [#allocation2], 4
      %s377 = int_to_ptr.vmem [resolvable:$true] %s376
      %379 = dma.vmem_to_hbm [thread:$0]  %s377, 32, %s8, [#allocation3]
    $region37: #{tpu_custom_call.1} parent=1 // pred_fallthru
      _
    // Predicated region
    $region38: #{tpu_custom_call.1} parent=1 // pred_check
      _
    $region39: #{tpu_custom_call.1} parent=1 // pred_check_branch
      %381 = sbr.rel (0) target = $region41
    $region40: #{tpu_custom_call.1} parent=1 // pred_region
      %382 = dma.done [#allocation3], 32
    $region41: #{tpu_custom_call.1} parent=1 // pred_fallthru
      _
    %383 = vsyncpa [#allocation3], 1

</llo_original>
